<compile_context>
chip_gen: v6e
topology: v6e:2x2x1
jax: 0.10.0
libtpu: 0.0.40
codegen_flags: <defaults>
</compile_context>

<pallas_src>
import jax
import jax.numpy as jnp
from jax import lax
from jax.experimental import pallas as pl
from jax.experimental.pallas import tpu as pltpu

EPS = 1e-5    # PyTorch BatchNorm1d default eps
LANE = 128    # TPU lane width


def _round_up(x, m):
    return (x + m - 1) // m * m


def _cdiv(a, b):
    return -(-a // b)


def _pad2(a, rows, cols):
    r, c = a.shape
    return jnp.pad(a, ((0, rows - r), (0, cols - c)))


# ---------------------------------------------------------------------------
# Kernel factory: (x_cat, x_cont) tile -> fused emb+Linear1 -> ReLU ->
#                 Linear2 -> ReLU -> Linear3, narrow store.
# BNs are pre-folded into the weights; embedding tables are pre-fused into M.
# ---------------------------------------------------------------------------
def _make_kernel(offsets, out_sz, compute_dtype):
    n_cat = len(offsets)

    def kernel(xcat_ref, xcont_ref, m_ref, w1c_ref, w2_ref, w3_ref, b_ref, out_ref):
        codes_p = m_ref.shape[0]
        h1p = m_ref.shape[1]
        h2p = w2_ref.shape[1]

        # ---- Fused embedding lookup + layer-1 matmul ------------------------
        # E_i[idx] @ W1_i == onehot(idx) @ (E_i @ W1_i), so all categorical
        # columns become one multi-hot matmul against the fused table M.
        cat = xcat_ref[...]                                        # (bm, n_cat) i32
        code_iota = lax.broadcasted_iota(jnp.int32, (1, codes_p), 1)
        hot = None
        for i in range(n_cat):                                     # n_cat is tiny/static
            hit = (cat[:, i:i + 1] + offsets[i]) == code_iota      # (bm, codes_p)
            hot = hit if hot is None else (hot | hit)
        hot = hot.astype(compute_dtype)

        h = jnp.dot(hot, m_ref[...], preferred_element_type=jnp.float32)
        # Continuous features (bn_cont already folded into w1c / b1).
        h = h + jnp.dot(xcont_ref[...], w1c_ref[...],
                        preferred_element_type=jnp.float32)
        h = jnp.maximum(h + b_ref[0:1, :h1p], 0.0)

        # ---- Layer 2 (bn1 folded into w2/b2): Linear -> ReLU ----------------
        h = jnp.dot(h.astype(compute_dtype), w2_ref[...],
                    preferred_element_type=jnp.float32)
        h = jnp.maximum(h + b_ref[1:2, :h2p], 0.0)

        # ---- Output head (bn2 folded into w3/b3) ----------------------------
        o = jnp.dot(h.astype(compute_dtype), w3_ref[...],
                    preferred_element_type=jnp.float32)
        # Narrow store: only the real out_sz lane(s) go back to HBM.
        out_ref[...] = o[:, :out_sz] + b_ref[2:3, :out_sz]

    return kernel


# ---------------------------------------------------------------------------
# Parameter init mirroring the PyTorch module's shapes
# ---------------------------------------------------------------------------
def _bn_params(key, n):
    k1, k2, k3, k4 = jax.random.split(key, 4)
    gamma = 1.0 + 0.1 * jax.random.normal(k1, (1, n), jnp.float32)
    beta = 0.1 * jax.random.normal(k2, (1, n), jnp.float32)
    mean = 0.1 * jax.random.normal(k3, (1, n), jnp.float32)
    var = 1.0 + 0.1 * jax.random.uniform(k4, (1, n), jnp.float32)
    return gamma, beta, mean, var


def init_params(key, embedding_dim, n_cont, out_sz, layers):
    n_emb = sum(out for _, out in embedding_dim)
    n_in = n_emb + n_cont
    keys = jax.random.split(key, 16)
    ki = iter(keys)

    params = {}
    params["emb_tables"] = [
        0.1 * jax.random.normal(next(ki), (inp, out), jnp.float32)
        for inp, out in embedding_dim
    ]
    params["bnc"] = _bn_params(next(ki), n_cont)

    h1, h2 = layers
    params["w1"] = 0.1 * jax.random.normal(next(ki), (n_in, h1), jnp.float32)
    params["b1"] = 0.01 * jax.random.normal(next(ki), (1, h1), jnp.float32)
    params["bn1"] = _bn_params(next(ki), h1)
    params["w2"] = 0.1 * jax.random.normal(next(ki), (h1, h2), jnp.float32)
    params["b2"] = 0.01 * jax.random.normal(next(ki), (1, h2), jnp.float32)
    params["bn2"] = _bn_params(next(ki), h2)
    params["w3"] = 0.1 * jax.random.normal(next(ki), (h2, out_sz), jnp.float32)
    params["b3"] = 0.01 * jax.random.normal(next(ki), (1, out_sz), jnp.float32)
    params["n_emb"] = n_emb
    return params


# ---------------------------------------------------------------------------
# Wrapper: trace-time folding (BN -> Linear, embeddings -> W1), padding, tiling
# ---------------------------------------------------------------------------
def feedforward_nn(x_cat, x_cont, params, *, block_batch=1024,
                   compute_dtype=jnp.bfloat16):
    tables = params["emb_tables"]
    edims = [int(t.shape[1]) for t in tables]
    n_cat = len(tables)
    n_emb = sum(edims)
    B = x_cat.shape[0]
    n_cont = x_cont.shape[1]

    w1, b1 = params["w1"], params["b1"]
    w2, b2 = params["w2"], params["b2"]
    w3, b3 = params["w3"], params["b3"]
    h1, h2, out_sz = w1.shape[1], w2.shape[1], w3.shape[1]

    # ---- Fold eval-mode BatchNorms into the adjacent Linears (trace time) ----
    gc, bc, mc, vc = params["bnc"]
    sc = gc * lax.rsqrt(vc + EPS)                           # (1, n_cont)
    w1_emb = w1[:n_emb]
    w1_cont = sc.reshape(-1, 1) * w1[n_emb:]                # bn_cont scale -> W1 cont rows
    b1f = b1 + (bc - mc * sc) @ w1[n_emb:]

    g1, be1, m1, v1 = params["bn1"]
    s1 = g1 * lax.rsqrt(v1 + EPS)                           # (1, h1)
    w2f = s1.reshape(-1, 1) * w2
    b2f = b2 + (be1 - m1 * s1) @ w2

    g2, be2, m2, v2 = params["bn2"]
    s2 = g2 * lax.rsqrt(v2 + EPS)                           # (1, h2)
    w3f = s2.reshape(-1, 1) * w3
    b3f = b3 + (be2 - m2 * s2) @ w3

    # ---- Fuse each embedding table with its block of W1 rows (trace time) ----
    offsets, m_blocks = [], []
    acc = 0
    row = 0
    for t, d in zip(tables, edims):
        m_blocks.append(t @ w1_emb[row:row + d])            # (card_i, h1)
        offsets.append(acc)
        acc += int(t.shape[0])
        row += d
    n_codes = acc
    M = jnp.concatenate(m_blocks, axis=0)                   # (n_codes, h1)

    # ---- Lane/sublane-friendly zero padding (exact: pads feed zero weights) ---
    h1p = _round_up(h1, LANE)
    h2p = _round_up(h2, LANE)
    op = _round_up(out_sz, LANE)
    wp = max(h1p, h2p, op)
    codes_p = _round_up(n_codes, 16)

    Mp = _pad2(M, codes_p, h1p).astype(compute_dtype)
    w1cp = _pad2(w1_cont, n_cont, h1p).astype(compute_dtype)
    w2p = _pad2(w2f, h1p, h2p).astype(compute_dtype)
    w3p = _pad2(w3f, h2p, op).astype(compute_dtype)
    # Pack the three (folded) biases into one f32 array: elementwise stays f32.
    b_packed = jnp.concatenate(
        [_pad2(b1f, 1, wp), _pad2(b2f, 1, wp), _pad2(b3f, 1, wp)], axis=0)  # (3, wp)

    # ---- Batch tiling: >=2 grid steps when possible (v7x 2 TCs), low pad waste --
    cbytes = jnp.dtype(compute_dtype).itemsize
    min_tile = 8 * (4 // cbytes)                 # 8 rows for f32, 16 for bf16
    b_rounded = _round_up(B, min_tile)
    nt = _cdiv(b_rounded, block_batch)
    if b_rounded >= 2 * min_tile:
        nt = max(nt, 2)                          # give both v7x TensorCores a tile
    bm = _round_up(_cdiv(b_rounded, nt), min_tile)
    bp_total = bm * nt

    xcat_p = x_cat.astype(jnp.int32)
    xcont_p = x_cont.astype(compute_dtype)
    if bp_total != B:
        pad = bp_total - B
        xcat_p = jnp.pad(xcat_p, ((0, pad), (0, 0)))   # padded rows -> index 0 (valid)
        xcont_p = jnp.pad(xcont_p, ((0, pad), (0, 0)))

    # ---- Scoped-VMEM budget (only relevant for very large block_batch / v5e) ----
    vmem_est = (
        bm * LANE * (2 * 4 + 2 * cbytes + 2 * 4)                 # x_cat/x_cont/out bufs
        + bm * (h1p + h2p + op) * 4 + bm * codes_p * cbytes      # f32 intermediates
        + 2 * (codes_p * h1p + n_cont * h1p + h1p * h2p + h2p * op) * cbytes
        + 2 * 3 * wp * 4)
    cp_kwargs = dict(dimension_semantics=("parallel",))
    if vmem_est > 12 * 1024 * 1024:              # beyond v5e's 16 MiB scoped default
        cp_kwargs["vmem_limit_bytes"] = int(min(vmem_est + (8 << 20), 64 << 20))

    kernel = _make_kernel(tuple(offsets), int(out_sz), compute_dtype)
    const = lambda i: (0, 0)                     # resident operands, never re-fetched

    out = pl.pallas_call(
        kernel,
        out_shape=jax.ShapeDtypeStruct((bp_total, out_sz), jnp.float32),
        grid=(nt,),
        in_specs=[
            pl.BlockSpec((bm, n_cat), lambda i: (i, 0)),     # x_cat tile (int32)
            pl.BlockSpec((bm, n_cont), lambda i: (i, 0)),    # x_cont tile
            pl.BlockSpec((codes_p, h1p), const),             # fused emb tables @ W1_emb
            pl.BlockSpec((n_cont, h1p), const),              # bn_cont-folded W1 cont rows
            pl.BlockSpec((h1p, h2p), const),                 # bn1-folded W2
            pl.BlockSpec((h2p, op), const),                  # bn2-folded W3 (lane-padded)
            pl.BlockSpec((3, wp), const),                    # packed folded biases (f32)
        ],
        out_specs=pl.BlockSpec((bm, out_sz), lambda i: (i, 0)),   # narrow output
        compiler_params=pltpu.CompilerParams(**cp_kwargs),
    )(xcat_p, xcont_p, Mp, w1cp, w2p, w3p, b_packed)

    return out[:B]


# ---------------------------------------------------------------------------
# Pure-JAX reference (unfused, unfolded) for sanity checking
# ---------------------------------------------------------------------------
def reference_forward(x_cat, x_cont, params):
    embs = [tbl[x_cat[:, i]] for i, tbl in enumerate(params["emb_tables"])]
    x = jnp.concatenate(embs, axis=1).astype(jnp.float32)
    g, b, m, v = params["bnc"]
    xc = (x_cont - m) * lax.rsqrt(v + EPS) * g + b
    x = jnp.concatenate([x, xc], axis=1)
    h = x @ params["w1"] + params["b1"]
    h = jnp.maximum(h, 0.0)
    g, b, m, v = params["bn1"]
    h = (h - m) * lax.rsqrt(v + EPS) * g + b
    h = h @ params["w2"] + params["b2"]
    h = jnp.maximum(h, 0.0)
    g, b, m, v = params["bn2"]
    h = (h - m) * lax.rsqrt(v + EPS) * g + b
    return h @ params["w3"] + params["b3"]


if __name__ == "__main__":
    # Config implied by the script: 4 categorical cols, 5 continuous cols, out_sz=1.
    cat_dims = [15, 5, 2, 4]
    embedding_dim = [(x, min(50, (x + 1) // 2)) for x in cat_dims]  # [(15,8),(5,3),(2,1),(4,2)]
    n_cont = 5
    out_sz = 1
    layers = [64, 32]
    B = 8

    key = jax.random.PRNGKey(0)
    k_cat, k_cont, k_params = jax.random.split(key, 3)

    x_cat = jnp.stack(
        [
            jax.random.randint(jax.random.fold_in(k_cat, i), (B,), 0, d)
            for i, d in enumerate(cat_dims)
        ],
        axis=1,
    ).astype(jnp.int32)                                           # (B, 4)
    x_cont = jax.random.normal(k_cont, (B, n_cont), jnp.float32)  # (B, 5)

    params = init_params(k_params, embedding_dim, n_cont, out_sz, layers)
    ref = reference_forward(x_cat, x_cont, params)

    # Exactness check with f32 MXU operands.
    out_f32 = jax.block_until_ready(
        feedforward_nn(x_cat, x_cont, params, compute_dtype=jnp.float32))
    assert out_f32.shape == (B, out_sz), out_f32.shape
    assert jnp.allclose(out_f32, ref, atol=1e-4, rtol=1e-4), (out_f32, ref)

    # Default path (bf16 MXU operands, f32 accumulation): loose tolerance vs f32 ref.
    out = jax.block_until_ready(feedforward_nn(x_cat, x_cont, params))
    assert out.shape == (B, out_sz), out.shape
    assert jnp.allclose(out, ref, atol=5e-2, rtol=5e-2), (out, ref)

    print("KERNEL_OK")
</pallas_src>

<mosaic_0001>
module attributes {stable_mosaic.version = 11 : i64} {
  func.func @kernel(%arg0: i32, %arg1: memref<8x4xi32, #tpu.memory_space<vmem>>, %arg2: memref<8x5xf32, #tpu.memory_space<vmem>>, %arg3: memref<32x128xf32, #tpu.memory_space<vmem>>, %arg4: memref<5x128xf32, #tpu.memory_space<vmem>>, %arg5: memref<128x128xf32, #tpu.memory_space<vmem>>, %arg6: memref<128x128xf32, #tpu.memory_space<vmem>>, %arg7: memref<3x128xf32, #tpu.memory_space<vmem>>, %arg8: memref<8x1xf32, #tpu.memory_space<vmem>>) attributes {dimension_semantics = [#tpu.dimension_semantics<parallel>], iteration_bounds = array<i64: 1>, scalar_prefetch = 0 : i64, scratch_operands = 0 : i64, tpu.core_type = #tpu.core_type<tc>, window_params = [{transform_indices = @transform_0, window_bounds = array<i64: 8, 4>}, {transform_indices = @transform_1, window_bounds = array<i64: 8, 5>}, {pipeline_mode = #tpu.pipeline_mode<synchronous>, transform_indices = @transform_2, window_bounds = array<i64: 32, 128>}, {pipeline_mode = #tpu.pipeline_mode<synchronous>, transform_indices = @transform_3, window_bounds = array<i64: 5, 128>}, {pipeline_mode = #tpu.pipeline_mode<synchronous>, transform_indices = @transform_4, window_bounds = array<i64: 128, 128>}, {pipeline_mode = #tpu.pipeline_mode<synchronous>, transform_indices = @transform_5, window_bounds = array<i64: 128, 128>}, {pipeline_mode = #tpu.pipeline_mode<synchronous>, transform_indices = @transform_6, window_bounds = array<i64: 3, 128>}, {transform_indices = @transform_7, window_bounds = array<i64: 8, 1>}]} {
    %c0 = arith.constant 0 : index
    %c0_0 = arith.constant 0 : index
    %0 = vector.load %arg1[%c0, %c0_0] : memref<8x4xi32, #tpu.memory_space<vmem>>, vector<8x4xi32>
    %1 = tpu.iota {dimensions = array<i32: 1>} : vector<1x32xi32>
    %2 = vector.extract_strided_slice %0 {offsets = [0, 0], sizes = [8, 1], strides = [1, 1]} : vector<8x4xi32> to vector<8x1xi32>
    %c0_i32 = arith.constant 0 : i32
    %3 = vector.broadcast %c0_i32 : i32 to vector<8x1xi32>
    %4 = arith.addi %2, %3 : vector<8x1xi32>
    %5 = vector.broadcast %4 : vector<8x1xi32> to vector<8x32xi32>
    %6 = vector.broadcast %1 : vector<1x32xi32> to vector<8x32xi32>
    %7 = arith.cmpi eq, %5, %6 : vector<8x32xi32>
    %8 = vector.extract_strided_slice %0 {offsets = [0, 1], sizes = [8, 1], strides = [1, 1]} : vector<8x4xi32> to vector<8x1xi32>
    %c15_i32 = arith.constant 15 : i32
    %9 = vector.broadcast %c15_i32 : i32 to vector<8x1xi32>
    %10 = arith.addi %8, %9 : vector<8x1xi32>
    %11 = vector.broadcast %10 : vector<8x1xi32> to vector<8x32xi32>
    %12 = vector.broadcast %1 : vector<1x32xi32> to vector<8x32xi32>
    %13 = arith.cmpi eq, %11, %12 : vector<8x32xi32>
    %14 = arith.ori %7, %13 : vector<8x32xi1>
    %15 = vector.extract_strided_slice %0 {offsets = [0, 2], sizes = [8, 1], strides = [1, 1]} : vector<8x4xi32> to vector<8x1xi32>
    %c20_i32 = arith.constant 20 : i32
    %16 = vector.broadcast %c20_i32 : i32 to vector<8x1xi32>
    %17 = arith.addi %15, %16 : vector<8x1xi32>
    %18 = vector.broadcast %17 : vector<8x1xi32> to vector<8x32xi32>
    %19 = vector.broadcast %1 : vector<1x32xi32> to vector<8x32xi32>
    %20 = arith.cmpi eq, %18, %19 : vector<8x32xi32>
    %21 = arith.ori %14, %20 : vector<8x32xi1>
    %22 = vector.extract_strided_slice %0 {offsets = [0, 3], sizes = [8, 1], strides = [1, 1]} : vector<8x4xi32> to vector<8x1xi32>
    %c22_i32 = arith.constant 22 : i32
    %23 = vector.broadcast %c22_i32 : i32 to vector<8x1xi32>
    %24 = arith.addi %22, %23 : vector<8x1xi32>
    %25 = vector.broadcast %24 : vector<8x1xi32> to vector<8x32xi32>
    %26 = vector.broadcast %1 : vector<1x32xi32> to vector<8x32xi32>
    %27 = arith.cmpi eq, %25, %26 : vector<8x32xi32>
    %28 = arith.ori %21, %27 : vector<8x32xi1>
    %29 = arith.extui %28 : vector<8x32xi1> to vector<8x32xi32>
    %30 = arith.sitofp %29 : vector<8x32xi32> to vector<8x32xf32>
    %c0_1 = arith.constant 0 : index
    %c0_2 = arith.constant 0 : index
    %31 = vector.load %arg3[%c0_1, %c0_2] : memref<32x128xf32, #tpu.memory_space<vmem>>, vector<32x128xf32>
    %cst = arith.constant dense<0.000000e+00> : vector<8x128xf32>
    %32 = tpu.matmul %30, %31, %cst {dimension_numbers = #tpu.dot_dimension_numbers<[1], [0], [0], [1], [0, 0, 1, 1], [], []>} : vector<8x32xf32>, vector<32x128xf32>, vector<8x128xf32> -> vector<8x128xf32>
    %c0_3 = arith.constant 0 : index
    %c0_4 = arith.constant 0 : index
    %33 = vector.load %arg2[%c0_3, %c0_4] : memref<8x5xf32, #tpu.memory_space<vmem>>, vector<8x5xf32>
    %c0_5 = arith.constant 0 : index
    %c0_6 = arith.constant 0 : index
    %34 = vector.load %arg4[%c0_5, %c0_6] : memref<5x128xf32, #tpu.memory_space<vmem>>, vector<5x128xf32>
    %cst_7 = arith.constant dense<0.000000e+00> : vector<8x128xf32>
    %35 = tpu.matmul %33, %34, %cst_7 {dimension_numbers = #tpu.dot_dimension_numbers<[1], [0], [0], [1], [0, 0, 1, 1], [], []>} : vector<8x5xf32>, vector<5x128xf32>, vector<8x128xf32> -> vector<8x128xf32>
    %36 = arith.addf %32, %35 : vector<8x128xf32>
    %c0_8 = arith.constant 0 : index
    %c0_9 = arith.constant 0 : index
    %37 = vector.load %arg7[%c0_8, %c0_9] : memref<3x128xf32, #tpu.memory_space<vmem>>, vector<1x128xf32>
    %38 = vector.broadcast %37 : vector<1x128xf32> to vector<8x128xf32>
    %39 = arith.addf %36, %38 : vector<8x128xf32>
    %cst_10 = arith.constant 0.000000e+00 : f32
    %40 = vector.broadcast %cst_10 : f32 to vector<8x128xf32>
    %41 = arith.maximumf %39, %40 : vector<8x128xf32>
    %c0_11 = arith.constant 0 : index
    %c0_12 = arith.constant 0 : index
    %42 = vector.load %arg5[%c0_11, %c0_12] : memref<128x128xf32, #tpu.memory_space<vmem>>, vector<128x128xf32>
    %cst_13 = arith.constant dense<0.000000e+00> : vector<8x128xf32>
    %43 = tpu.matmul %41, %42, %cst_13 {dimension_numbers = #tpu.dot_dimension_numbers<[1], [0], [0], [1], [0, 0, 1, 1], [], []>} : vector<8x128xf32>, vector<128x128xf32>, vector<8x128xf32> -> vector<8x128xf32>
    %c1 = arith.constant 1 : index
    %c0_14 = arith.constant 0 : index
    %44 = vector.load %arg7[%c1, %c0_14] : memref<3x128xf32, #tpu.memory_space<vmem>>, vector<1x128xf32>
    %45 = vector.broadcast %44 : vector<1x128xf32> to vector<8x128xf32>
    %46 = arith.addf %43, %45 : vector<8x128xf32>
    %cst_15 = arith.constant 0.000000e+00 : f32
    %47 = vector.broadcast %cst_15 : f32 to vector<8x128xf32>
    %48 = arith.maximumf %46, %47 : vector<8x128xf32>
    %c0_16 = arith.constant 0 : index
    %c0_17 = arith.constant 0 : index
    %49 = vector.load %arg6[%c0_16, %c0_17] : memref<128x128xf32, #tpu.memory_space<vmem>>, vector<128x128xf32>
    %cst_18 = arith.constant dense<0.000000e+00> : vector<8x128xf32>
    %50 = tpu.matmul %48, %49, %cst_18 {dimension_numbers = #tpu.dot_dimension_numbers<[1], [0], [0], [1], [0, 0, 1, 1], [], []>} : vector<8x128xf32>, vector<128x128xf32>, vector<8x128xf32> -> vector<8x128xf32>
    %51 = vector.extract_strided_slice %50 {offsets = [0, 0], sizes = [8, 1], strides = [1, 1]} : vector<8x128xf32> to vector<8x1xf32>
    %c2 = arith.constant 2 : index
    %c0_19 = arith.constant 0 : index
    %52 = vector.load %arg7[%c2, %c0_19] : memref<3x128xf32, #tpu.memory_space<vmem>>, vector<1x1xf32>
    %53 = vector.broadcast %52 : vector<1x1xf32> to vector<8x1xf32>
    %54 = arith.addf %51, %53 : vector<8x1xf32>
    %c0_20 = arith.constant 0 : index
    %c0_21 = arith.constant 0 : index
    %55 = vector.load %arg8[%c0_20, %c0_21] : memref<8x1xf32, #tpu.memory_space<vmem>>, vector<8x1xf32>
    tpu.vector_store %arg8[%c0_20, %c0_21], %54 {strides = array<i32>} : memref<8x1xf32, #tpu.memory_space<vmem>>, vector<8x1xf32>,
    return
  }
  func.func @transform_0(%arg0: i32) -> (i32, i32) {
    %c0_i32 = arith.constant 0 : i32
    %c0_i32_0 = arith.constant 0 : i32
    return %arg0, %c0_i32 : i32, i32
  }
  func.func @transform_1(%arg0: i32) -> (i32, i32) {
    %c0_i32 = arith.constant 0 : i32
    %c0_i32_0 = arith.constant 0 : i32
    return %arg0, %c0_i32 : i32, i32
  }
  func.func @transform_2(%arg0: i32) -> (i32, i32) {
    %c0_i32 = arith.constant 0 : i32
    %c0_i32_0 = arith.constant 0 : i32
    %c0_i32_1 = arith.constant 0 : i32
    return %c0_i32, %c0_i32_0 : i32, i32
  }
  func.func @transform_3(%arg0: i32) -> (i32, i32) {
    %c0_i32 = arith.constant 0 : i32
    %c0_i32_0 = arith.constant 0 : i32
    %c0_i32_1 = arith.constant 0 : i32
    return %c0_i32, %c0_i32_0 : i32, i32
  }
  func.func @transform_4(%arg0: i32) -> (i32, i32) {
    %c0_i32 = arith.constant 0 : i32
    %c0_i32_0 = arith.constant 0 : i32
    %c0_i32_1 = arith.constant 0 : i32
    return %c0_i32, %c0_i32_0 : i32, i32
  }
  func.func @transform_5(%arg0: i32) -> (i32, i32) {
    %c0_i32 = arith.constant 0 : i32
    %c0_i32_0 = arith.constant 0 : i32
    %c0_i32_1 = arith.constant 0 : i32
    return %c0_i32, %c0_i32_0 : i32, i32
  }
  func.func @transform_6(%arg0: i32) -> (i32, i32) {
    %c0_i32 = arith.constant 0 : i32
    %c0_i32_0 = arith.constant 0 : i32
    %c0_i32_1 = arith.constant 0 : i32
    return %c0_i32, %c0_i32_0 : i32, i32
  }
  func.func @transform_7(%arg0: i32) -> (i32, i32) {
    %c0_i32 = arith.constant 0 : i32
    %c0_i32_0 = arith.constant 0 : i32
    return %arg0, %c0_i32 : i32, i32
  }
}

</mosaic_0001>

<llo_original>
// kernel: tpu_custom_call.1
$region0: #{tpu_custom_call.1}
  #allocation0 [shape = 'u32[]', space=smem, size = 0x4, offset = 0x4, fixed_abs, tag = 'smem constant byte address 0x4 - core index']
  #allocation1 [shape = 'u32[144,128]{1,0:T(1,128)}', space=vmem, size = 0x12000, scoped, tag = 'internal scratch']
  %s0 = inlined_call_operand.vmem [shape: s32[8,4], index: 0, kind: input, shape index: {}]
  %s1 = inlined_call_operand.vmem [shape: f32[8,5], index: 1, kind: input, shape index: {}]
  %s2 = inlined_call_operand.hbm [shape: f32[32,128], index: 2, kind: input, shape index: {}]
  %s3 = inlined_call_operand.vmem [shape: f32[5,128], index: 3, kind: input, shape index: {}]
  %s4 = inlined_call_operand.hbm [shape: f32[128,128], index: 4, kind: input, shape index: {}]
  %s5 = inlined_call_operand.hbm [shape: f32[128,128], index: 5, kind: input, shape index: {}]
  %s6 = inlined_call_operand.vmem [shape: f32[3,128], index: 6, kind: input, shape index: {}]
  %s7 = inlined_call_operand.vmem [shape: f32[8,1], index: 7, kind: output, shape index: {}]
  %s8 = sld [smem:[#allocation0]]
  $region50: #{tpu_custom_call.1} parent=0
    _
  %s10 = ssub.s32 1, %s8
  %s11 = scalar_select 0, %s10, %s8
  $region1: #{tpu_custom_call.1} parent=0
    #allocation2 [shape = 'u8[16384]{0}', space=vmem, size = 0x4000, scoped, tag = 'input window, operand 2, single buffered']
    #allocation3 [shape = 's32[1]{0}', space=sflag, size = 0x4, scoped, tag = 'scoped memory for tpu_custom_call.1']
    #allocation4 [shape = 'u8[65536]{0}', space=vmem, size = 0x10000, scoped, tag = 'input window, operand 4, single buffered']
    #allocation5 [shape = 's32[1]{0}', space=sflag, size = 0x4, scoped, tag = 'scoped memory for tpu_custom_call.1']
    #allocation6 [shape = 'u8[65536]{0}', space=vmem, size = 0x10000, scoped, tag = 'input window, operand 5, single buffered']
    %12 = vsyncpa [#allocation3], 0
    %13 = vsyncpa [#allocation5], 0
    // Predicated region
    $region2: #{tpu_custom_call.1} parent=1 // pred_check
      _
    $region3: #{tpu_custom_call.1} parent=1 // pred_check_branch
      %15 = sbr.rel (0) target = $region5
    $region4: #{tpu_custom_call.1} parent=1 // pred_region
      _
    $region5: #{tpu_custom_call.1} parent=1 // pred_fallthru
      _
    // Predicated region
    $region6: #{tpu_custom_call.1} parent=1 // pred_check
      _
    $region7: #{tpu_custom_call.1} parent=1 // pred_check_branch
      %17 = sbr.rel (0) target = $region9
    $region8: #{tpu_custom_call.1} parent=1 // pred_region
      _
    $region9: #{tpu_custom_call.1} parent=1 // pred_fallthru
      _
    // Predicated region
    $region10: #{tpu_custom_call.1} parent=1 // pred_check
      _
    $region11: #{tpu_custom_call.1} parent=1 // pred_check_branch
      %19 = sbr.rel (0) target = $region13
    $region12: #{tpu_custom_call.1} parent=1 // pred_region
      %s21 = ssub.s32 512, 512
      %22 = vsyncadd [#allocation3], %s21
      %s23 = sshll.u32 [#allocation2], 4
      %s24 = int_to_ptr.vmem [resolvable:$true] %s23
      %29 = dma.hbm_to_vmem [thread:$0]  %s2, 512, %s24, [#allocation3], 128, 128, 8
    $region13: #{tpu_custom_call.1} parent=1 // pred_fallthru
      _
    // Predicated region
    $region14: #{tpu_custom_call.1} parent=1 // pred_check
      _
    $region15: #{tpu_custom_call.1} parent=1 // pred_check_branch
      %31 = sbr.rel (0) target = $region17
    $region16: #{tpu_custom_call.1} parent=1 // pred_region
      _
    $region17: #{tpu_custom_call.1} parent=1 // pred_fallthru
      _
    // Predicated region
    $region18: #{tpu_custom_call.1} parent=1 // pred_check
      _
    $region19: #{tpu_custom_call.1} parent=1 // pred_check_branch
      %33 = sbr.rel (0) target = $region21
    $region20: #{tpu_custom_call.1} parent=1 // pred_region
      %s35 = ssub.s32 2048, 2048
      %36 = vsyncadd [#allocation5], %s35
      %s37 = sshll.u32 [#allocation4], 4
      %s38 = int_to_ptr.vmem [resolvable:$true] %s37
      %43 = dma.hbm_to_vmem [thread:$0]  %s4, 2048, %s38, [#allocation5], 128, 128, 8
    $region21: #{tpu_custom_call.1} parent=1 // pred_fallthru
      _
    // Predicated region
    $region22: #{tpu_custom_call.1} parent=1 // pred_check
      _
    $region23: #{tpu_custom_call.1} parent=1 // pred_check_branch
      %45 = sbr.rel (0) target = $region25
    $region24: #{tpu_custom_call.1} parent=1 // pred_region
      %s47 = ssub.s32 2048, 2048
      %48 = vsyncadd [#allocation5], %s47
      %s49 = sshll.u32 [#allocation6], 4
      %s50 = int_to_ptr.vmem [resolvable:$true] %s49
      %55 = dma.hbm_to_vmem [thread:$0]  %s5, 2048, %s50, [#allocation5], 128, 128, 8
    $region25: #{tpu_custom_call.1} parent=1 // pred_fallthru
      _
    // Predicated region
    $region26: #{tpu_custom_call.1} parent=1 // pred_check
      _
    $region27: #{tpu_custom_call.1} parent=1 // pred_check_branch
      %57 = sbr.rel (0) target = $region29
    $region28: #{tpu_custom_call.1} parent=1 // pred_region
      _
    $region29: #{tpu_custom_call.1} parent=1 // pred_fallthru
      _
    // Predicated region
    $region30: #{tpu_custom_call.1} parent=1 // pred_check
      _
    $region31: #{tpu_custom_call.1} parent=1 // pred_check_branch
      %59 = sbr.rel (0) target = $region33
    $region32: #{tpu_custom_call.1} parent=1 // pred_region
      %60 = dma.done [#allocation3], 512
    $region33: #{tpu_custom_call.1} parent=1 // pred_fallthru
      _
    // Predicated region
    $region34: #{tpu_custom_call.1} parent=1 // pred_check
      _
    $region35: #{tpu_custom_call.1} parent=1 // pred_check_branch
      %62 = sbr.rel (0) target = $region37
    $region36: #{tpu_custom_call.1} parent=1 // pred_region
      %63 = dma.done [#allocation5], 2048
    $region37: #{tpu_custom_call.1} parent=1 // pred_fallthru
      _
    // Predicated region
    $region38: #{tpu_custom_call.1} parent=1 // pred_check
      _
    $region39: #{tpu_custom_call.1} parent=1 // pred_check_branch
      %65 = sbr.rel (0) target = $region41
    $region40: #{tpu_custom_call.1} parent=1 // pred_region
      %66 = dma.done [#allocation5], 2048
    $region41: #{tpu_custom_call.1} parent=1 // pred_fallthru
      _
    %v67 = vld [vmem:[%s0] sm:$0xff]
    %v68 = vlaneseq
    %v69 = vand.u32 %v68, 127
    %70 = vset.pattern.permute.xlu0 0
    %71 = vperm.xlu0 %70, %v67
    %v72 = vpop.permute.xlu0 %71
    %vm73 = vcmp.eq.s32.totalorder %v72, %v69
    %v74 = vadd.s32 %v67, 15
    %75 = vset.pattern.permute.xlu0 1
    %76 = vperm.xlu0 %75, %v74
    %v77 = vpop.permute.xlu0 %76
    %vm78 = vcmp.eq.s32.totalorder %v77, %v69
    %vm79 = vmor %vm73, %vm78
    %v80 = vadd.s32 %v67, 20
    %81 = vset.pattern.permute.xlu0 2
    %82 = vperm.xlu0 %81, %v80
    %v83 = vpop.permute.xlu0 %82
    %vm84 = vcmp.eq.s32.totalorder %v83, %v69
    %vm85 = vmor %vm79, %vm84
    %v86 = vadd.s32 %v67, 22
    %87 = vset.pattern.permute.xlu0 3
    %88 = vperm.xlu0 %87, %v86
    %v89 = vpop.permute.xlu0 %88
    %vm90 = vcmp.eq.s32.totalorder %v89, %v69
    %vm91 = vmor %vm85, %vm90
    %v92 = vsel %vm91, 1, 0
    %v93 = vcvt.s32.f32 %v92
    %v94 = vld [vmem:[#allocation2] sm:$0xff]
    %v95 = vld [vmem:[#allocation2 + $0x8] sm:$0xff]
    %v96 = vld [vmem:[#allocation2 + $0x10] sm:$0xff]
    %v97 = vld [vmem:[#allocation2 + $0x18] sm:$0xff]
    %v98 = vld [vmem:[%s1] sm:$0xff]
    %v99 = vld [vmem:[%s3] sm:$0x1f]
    %vm100 = vcmask 39936
    %v102 = vsel %vm100, %v98, 0
    %vm104 = vcmask 1044480
    %v106 = vsel %vm104, %v99, 0
    %108 = vmatprep.subr.mxu0 0.0
    %109 = vmatpush1.msra.mxu0 0.0
    %110 = vmatprep.subr.mxu0 0.0
    %111 = vmatpush1.msra.mxu0 0.0
    %112 = vmatprep.subr.mxu0 0.0
    %113 = vmatpush1.msra.mxu0 0.0
    %114 = vmatprep.subr.mxu0 0.0
    %115 = vmatpush1.msra.mxu0 0.0
    %116 = vmatprep.subr.mxu0 0.0
    %117 = vmatpush1.msra.mxu0 0.0
    %118 = vmatprep.subr.mxu0 0.0
    %119 = vmatpush1.msra.mxu0 0.0
    %120 = vmatprep.subr.mxu0 0.0
    %121 = vmatpush1.msra.mxu0 0.0
    %122 = vmatprep.subr.mxu0 0.0
    %123 = vmatpush1.msra.mxu0 0.0
    %124 = vmatprep.subr.mxu0 0.0
    %125 = vmatpush1.msra.mxu0 0.0
    %126 = vmatprep.subr.mxu0 0.0
    %127 = vmatpush1.msra.mxu0 0.0
    %128 = vmatprep.subr.mxu0 0.0
    %129 = vmatpush1.msra.mxu0 0.0
    %130 = vmatprep.subr.mxu0 0.0
    %131 = vmatpush1.msra.mxu0 0.0
    %132 = vmatprep.subr.mxu0 0.0
    %133 = vmatpush1.msra.mxu0 0.0
    %134 = vmatprep.subr.mxu0 0.0
    %135 = vmatpush1.msra.mxu0 0.0
    %136 = vmatprep.subr.mxu0 0.0
    %137 = vmatpush1.msra.mxu0 0.0
    %138 = vmatprep.subr.mxu0 0.0
    %139 = vmatpush1.msra.mxu0 %v106
    %140 = vmatprep.subr.mxu0 0.0
    %141 = vmatpush2.msra.mxu0 0.0
    %142 = vmatprep.subr.mxu0 0.0
    %143 = vmatpush2.msra.mxu0 0.0
    %144 = vmatprep.subr.mxu0 0.0
    %145 = vmatpush2.msra.mxu0 0.0
    %146 = vmatprep.subr.mxu0 0.0
    %147 = vmatpush2.msra.mxu0 0.0
    %148 = vmatprep.subr.mxu0 0.0
    %149 = vmatpush2.msra.mxu0 0.0
    %150 = vmatprep.subr.mxu0 0.0
    %151 = vmatpush2.msra.mxu0 0.0
    %152 = vmatprep.subr.mxu0 0.0
    %153 = vmatpush2.msra.mxu0 0.0
    %154 = vmatprep.subr.mxu0 0.0
    %155 = vmatpush2.msra.mxu0 0.0
    %156 = vmatprep.subr.mxu0 0.0
    %157 = vmatpush2.msra.mxu0 0.0
    %158 = vmatprep.subr.mxu0 0.0
    %159 = vmatpush2.msra.mxu0 0.0
    %160 = vmatprep.subr.mxu0 0.0
    %161 = vmatpush2.msra.mxu0 0.0
    %162 = vmatprep.subr.mxu0 0.0
    %163 = vmatpush2.msra.mxu0 0.0
    %164 = vmatprep.subr.mxu0 0.0
    %165 = vmatpush2.msra.mxu0 0.0
    %166 = vmatprep.subr.mxu0 0.0
    %167 = vmatpush2.msra.mxu0 0.0
    %168 = vmatprep.subr.mxu0 0.0
    %169 = vmatpush2.msra.mxu0 0.0
    %170 = vmatprep.subr.mxu0 0.0
    %171 = vmatpush2.msra.mxu0 0.0
    %172 = vmatprep.mubr.f32.mxu0 0.0
    %173 = vmatmul.mubr.f32.gmra.mxu0 %v102
    %v174 = vpop.f32.mrf.mxu0
    %v175 = vadd.f32 0.0, %v174
    %v176 = vpop.f32.mrf.mxu0
    %177 = vdwg.mxu0
    %vm178 = vcmask 261120
    %v180 = vsel %vm178, %v93, 0
    %182 = vmatprep.subr.mxu0 0.0
    %183 = vmatpush1.msra.mxu0 0.0
    %184 = vmatprep.subr.mxu0 0.0
    %185 = vmatpush1.msra.mxu0 0.0
    %186 = vmatprep.subr.mxu0 0.0
    %187 = vmatpush1.msra.mxu0 0.0
    %188 = vmatprep.subr.mxu0 0.0
    %189 = vmatpush1.msra.mxu0 0.0
    %190 = vmatprep.subr.mxu0 0.0
    %191 = vmatpush1.msra.mxu0 0.0
    %192 = vmatprep.subr.mxu0 0.0
    %193 = vmatpush1.msra.mxu0 0.0
    %194 = vmatprep.subr.mxu0 0.0
    %195 = vmatpush1.msra.mxu0 0.0
    %196 = vmatprep.subr.mxu0 0.0
    %197 = vmatpush1.msra.mxu0 0.0
    %198 = vmatprep.subr.mxu0 0.0
    %199 = vmatpush1.msra.mxu0 0.0
    %200 = vmatprep.subr.mxu0 0.0
    %201 = vmatpush1.msra.mxu0 0.0
    %202 = vmatprep.subr.mxu0 0.0
    %203 = vmatpush1.msra.mxu0 0.0
    %204 = vmatprep.subr.mxu0 0.0
    %205 = vmatpush1.msra.mxu0 0.0
    %206 = vmatprep.subr.mxu0 0.0
    %207 = vmatpush1.msra.mxu0 %v97
    %208 = vmatprep.subr.mxu0 0.0
    %209 = vmatpush1.msra.mxu0 %v96
    %210 = vmatprep.subr.mxu0 0.0
    %211 = vmatpush1.msra.mxu0 %v95
    %212 = vmatprep.subr.mxu0 0.0
    %213 = vmatpush1.msra.mxu0 %v94
    %214 = vmatprep.subr.mxu0 0.0
    %215 = vmatpush2.msra.mxu0 0.0
    %216 = vmatprep.subr.mxu0 0.0
    %217 = vmatpush2.msra.mxu0 0.0
    %218 = vmatprep.subr.mxu0 0.0
    %219 = vmatpush2.msra.mxu0 0.0
    %220 = vmatprep.subr.mxu0 0.0
    %221 = vmatpush2.msra.mxu0 0.0
    %222 = vmatprep.subr.mxu0 0.0
    %223 = vmatpush2.msra.mxu0 0.0
    %224 = vmatprep.subr.mxu0 0.0
    %225 = vmatpush2.msra.mxu0 0.0
    %226 = vmatprep.subr.mxu0 0.0
    %227 = vmatpush2.msra.mxu0 0.0
    %228 = vmatprep.subr.mxu0 0.0
    %229 = vmatpush2.msra.mxu0 0.0
    %230 = vmatprep.subr.mxu0 0.0
    %231 = vmatpush2.msra.mxu0 0.0
    %232 = vmatprep.subr.mxu0 0.0
    %233 = vmatpush2.msra.mxu0 0.0
    %234 = vmatprep.subr.mxu0 0.0
    %235 = vmatpush2.msra.mxu0 0.0
    %236 = vmatprep.subr.mxu0 0.0
    %237 = vmatpush2.msra.mxu0 0.0
    %238 = vmatprep.subr.mxu0 0.0
    %239 = vmatpush2.msra.mxu0 0.0
    %240 = vmatprep.subr.mxu0 0.0
    %241 = vmatpush2.msra.mxu0 0.0
    %242 = vmatprep.subr.mxu0 0.0
    %243 = vmatpush2.msra.mxu0 0.0
    %244 = vmatprep.subr.mxu0 0.0
    %245 = vmatpush2.msra.mxu0 0.0
    %246 = vmatprep.mubr.f32.mxu0 0.0
    %247 = vmatmul.mubr.f32.gmra.mxu0 %v180
    %v248 = vpop.f32.mrf.mxu0
    %v249 = vadd.f32 %v175, %v248
    %v250 = vpop.f32.mrf.mxu0
    %251 = vdwg.mxu0
    %v252 = vld [vmem:[%s6] sm:$0x1]
    %v253 = vlaneseq
    %v254 = vshrl.u32 %v253, 7
    %v255 = vsub.s32 0, %v254
    %v256 = vrot.slane %v252, %v255
    %v257 = vadd.f32 %v249, %v256
    %v258 = vmax.f32 %v257, 0.0
    %v259 = vld [vmem:[#allocation4] sm:$0xff]
    %v260 = vld [vmem:[#allocation4 + $0x8] sm:$0xff]
    %v261 = vld [vmem:[#allocation4 + $0x10] sm:$0xff]
    %v262 = vld [vmem:[#allocation4 + $0x18] sm:$0xff]
    %v263 = vld [vmem:[#allocation4 + $0x20] sm:$0xff]
    %v264 = vld [vmem:[#allocation4 + $0x28] sm:$0xff]
    %v265 = vld [vmem:[#allocation4 + $0x30] sm:$0xff]
    %v266 = vld [vmem:[#allocation4 + $0x38] sm:$0xff]
    %v267 = vld [vmem:[#allocation4 + $0x40] sm:$0xff]
    %v268 = vld [vmem:[#allocation4 + $0x48] sm:$0xff]
    %v269 = vld [vmem:[#allocation4 + $0x50] sm:$0xff]
    %v270 = vld [vmem:[#allocation4 + $0x58] sm:$0xff]
    %v271 = vld [vmem:[#allocation4 + $0x60] sm:$0xff]
    %v272 = vld [vmem:[#allocation4 + $0x68] sm:$0xff]
    %v273 = vld [vmem:[#allocation4 + $0x70] sm:$0xff]
    %v274 = vld [vmem:[#allocation4 + $0x78] sm:$0xff]
    %v275 = vld [vmem:[%s6 + $0x1] sm:$0x1]
    %v276 = vlaneseq
    %v277 = vshrl.u32 %v276, 7
    %v278 = vsub.s32 0, %v277
    %v279 = vrot.slane %v275, %v278
    %280 = vmatprep.subr.mxu0 0.0
    %281 = vmatpush1.msra.mxu0 %v274
    %282 = vmatprep.subr.mxu0 0.0
    %283 = vmatpush1.msra.mxu0 %v273
    %284 = vmatprep.subr.mxu0 0.0
    %285 = vmatpush1.msra.mxu0 %v272
    %286 = vmatprep.subr.mxu0 0.0
    %287 = vmatpush1.msra.mxu0 %v271
    %288 = vmatprep.subr.mxu0 0.0
    %289 = vmatpush1.msra.mxu0 %v270
    %290 = vmatprep.subr.mxu0 0.0
    %291 = vmatpush1.msra.mxu0 %v269
    %292 = vmatprep.subr.mxu0 0.0
    %293 = vmatpush1.msra.mxu0 %v268
    %294 = vmatprep.subr.mxu0 0.0
    %295 = vmatpush1.msra.mxu0 %v267
    %296 = vmatprep.subr.mxu0 0.0
    %297 = vmatpush1.msra.mxu0 %v266
    %298 = vmatprep.subr.mxu0 0.0
    %299 = vmatpush1.msra.mxu0 %v265
    %300 = vmatprep.subr.mxu0 0.0
    %301 = vmatpush1.msra.mxu0 %v264
    %302 = vmatprep.subr.mxu0 0.0
    %303 = vmatpush1.msra.mxu0 %v263
    %304 = vmatprep.subr.mxu0 0.0
    %305 = vmatpush1.msra.mxu0 %v262
    %306 = vmatprep.subr.mxu0 0.0
    %307 = vmatpush1.msra.mxu0 %v261
    %308 = vmatprep.subr.mxu0 0.0
    %309 = vmatpush1.msra.mxu0 %v260
    %310 = vmatprep.subr.mxu0 0.0
    %311 = vmatpush1.msra.mxu0 %v259
    %312 = vmatprep.subr.mxu0 0.0
    %313 = vmatpush2.msra.mxu0 0.0
    %314 = vmatprep.subr.mxu0 0.0
    %315 = vmatpush2.msra.mxu0 0.0
    %316 = vmatprep.subr.mxu0 0.0
    %317 = vmatpush2.msra.mxu0 0.0
    %318 = vmatprep.subr.mxu0 0.0
    %319 = vmatpush2.msra.mxu0 0.0
    %320 = vmatprep.subr.mxu0 0.0
    %321 = vmatpush2.msra.mxu0 0.0
    %322 = vmatprep.subr.mxu0 0.0
    %323 = vmatpush2.msra.mxu0 0.0
    %324 = vmatprep.subr.mxu0 0.0
    %325 = vmatpush2.msra.mxu0 0.0
    %326 = vmatprep.subr.mxu0 0.0
    %327 = vmatpush2.msra.mxu0 0.0
    %328 = vmatprep.subr.mxu0 0.0
    %329 = vmatpush2.msra.mxu0 0.0
    %330 = vmatprep.subr.mxu0 0.0
    %331 = vmatpush2.msra.mxu0 0.0
    %332 = vmatprep.subr.mxu0 0.0
    %333 = vmatpush2.msra.mxu0 0.0
    %334 = vmatprep.subr.mxu0 0.0
    %335 = vmatpush2.msra.mxu0 0.0
    %336 = vmatprep.subr.mxu0 0.0
    %337 = vmatpush2.msra.mxu0 0.0
    %338 = vmatprep.subr.mxu0 0.0
    %339 = vmatpush2.msra.mxu0 0.0
    %340 = vmatprep.subr.mxu0 0.0
    %341 = vmatpush2.msra.mxu0 0.0
    %342 = vmatprep.subr.mxu0 0.0
    %343 = vmatpush2.msra.mxu0 0.0
    %344 = vmatprep.mubr.f32.mxu0 0.0
    %345 = vmatmul.mubr.f32.gmra.mxu0 %v258
    %v346 = vpop.f32.mrf.mxu0
    %v347 = vadd.f32 %v279, %v346
    %v348 = vpop.f32.mrf.mxu0
    %349 = vdwg.mxu0
    %v350 = vmax.f32 %v347, 0.0
    %v351 = vld [vmem:[#allocation6] sm:$0xff]
    %v352 = vld [vmem:[#allocation6 + $0x8] sm:$0xff]
    %v353 = vld [vmem:[#allocation6 + $0x10] sm:$0xff]
    %v354 = vld [vmem:[#allocation6 + $0x18] sm:$0xff]
    %v355 = vld [vmem:[#allocation6 + $0x20] sm:$0xff]
    %v356 = vld [vmem:[#allocation6 + $0x28] sm:$0xff]
    %v357 = vld [vmem:[#allocation6 + $0x30] sm:$0xff]
    %v358 = vld [vmem:[#allocation6 + $0x38] sm:$0xff]
    %v359 = vld [vmem:[#allocation6 + $0x40] sm:$0xff]
    %v360 = vld [vmem:[#allocation6 + $0x48] sm:$0xff]
    %v361 = vld [vmem:[#allocation6 + $0x50] sm:$0xff]
    %v362 = vld [vmem:[#allocation6 + $0x58] sm:$0xff]
    %v363 = vld [vmem:[#allocation6 + $0x60] sm:$0xff]
    %v364 = vld [vmem:[#allocation6 + $0x68] sm:$0xff]
    %v365 = vld [vmem:[#allocation6 + $0x70] sm:$0xff]
    %v366 = vld [vmem:[#allocation6 + $0x78] sm:$0xff]
    %367 = vmatprep.subr.mxu0 0.0
    %368 = vmatpush1.msra.mxu0 %v366
    %369 = vmatprep.subr.mxu0 0.0
    %370 = vmatpush1.msra.mxu0 %v365
    %371 = vmatprep.subr.mxu0 0.0
    %372 = vmatpush1.msra.mxu0 %v364
    %373 = vmatprep.subr.mxu0 0.0
    %374 = vmatpush1.msra.mxu0 %v363
    %375 = vmatprep.subr.mxu0 0.0
    %376 = vmatpush1.msra.mxu0 %v362
    %377 = vmatprep.subr.mxu0 0.0
    %378 = vmatpush1.msra.mxu0 %v361
    %379 = vmatprep.subr.mxu0 0.0
    %380 = vmatpush1.msra.mxu0 %v360
    %381 = vmatprep.subr.mxu0 0.0
    %382 = vmatpush1.msra.mxu0 %v359
    %383 = vmatprep.subr.mxu0 0.0
    %384 = vmatpush1.msra.mxu0 %v358
    %385 = vmatprep.subr.mxu0 0.0
    %386 = vmatpush1.msra.mxu0 %v357
    %387 = vmatprep.subr.mxu0 0.0
    %388 = vmatpush1.msra.mxu0 %v356
    %389 = vmatprep.subr.mxu0 0.0
    %390 = vmatpush1.msra.mxu0 %v355
    %391 = vmatprep.subr.mxu0 0.0
    %392 = vmatpush1.msra.mxu0 %v354
    %393 = vmatprep.subr.mxu0 0.0
    %394 = vmatpush1.msra.mxu0 %v353
    %395 = vmatprep.subr.mxu0 0.0
    %396 = vmatpush1.msra.mxu0 %v352
    %397 = vmatprep.subr.mxu0 0.0
    %398 = vmatpush1.msra.mxu0 %v351
    %399 = vmatprep.subr.mxu0 0.0
    %400 = vmatpush2.msra.mxu0 0.0
    %401 = vmatprep.subr.mxu0 0.0
    %402 = vmatpush2.msra.mxu0 0.0
    %403 = vmatprep.subr.mxu0 0.0
    %404 = vmatpush2.msra.mxu0 0.0
    %405 = vmatprep.subr.mxu0 0.0
    %406 = vmatpush2.msra.mxu0 0.0
    %407 = vmatprep.subr.mxu0 0.0
    %408 = vmatpush2.msra.mxu0 0.0
    %409 = vmatprep.subr.mxu0 0.0
    %410 = vmatpush2.msra.mxu0 0.0
    %411 = vmatprep.subr.mxu0 0.0
    %412 = vmatpush2.msra.mxu0 0.0
    %413 = vmatprep.subr.mxu0 0.0
    %414 = vmatpush2.msra.mxu0 0.0
    %415 = vmatprep.subr.mxu0 0.0
    %416 = vmatpush2.msra.mxu0 0.0
    %417 = vmatprep.subr.mxu0 0.0
    %418 = vmatpush2.msra.mxu0 0.0
    %419 = vmatprep.subr.mxu0 0.0
    %420 = vmatpush2.msra.mxu0 0.0
    %421 = vmatprep.subr.mxu0 0.0
    %422 = vmatpush2.msra.mxu0 0.0
    %423 = vmatprep.subr.mxu0 0.0
    %424 = vmatpush2.msra.mxu0 0.0
    %425 = vmatprep.subr.mxu0 0.0
    %426 = vmatpush2.msra.mxu0 0.0
    %427 = vmatprep.subr.mxu0 0.0
    %428 = vmatpush2.msra.mxu0 0.0
    %429 = vmatprep.subr.mxu0 0.0
    %430 = vmatpush2.msra.mxu0 0.0
    %431 = vmatprep.mubr.f32.mxu0 0.0
    %432 = vmatmul.mubr.f32.gmra.mxu0 %v350
    %v433 = vpop.f32.mrf.mxu0
    %v434 = vadd.f32 0.0, %v433
    %v435 = vpop.f32.mrf.mxu0
    %436 = vdwg.mxu0
    %v437 = vld [vmem:[%s6 + $0x2] sm:$0x1]
    %v438 = vlaneseq
    %v439 = vshrl.u32 %v438, 7
    %v440 = vsub.s32 0, %v439
    %v441 = vrot.slane %v437, %v440
    %v442 = vadd.f32 %v434, %v441
    %vm443 = vcmask 7168
    %444 = vst.msk [vmem:[%s7] sm:$0xff] %vm443, %v442
    // Predicated region
    $region42: #{tpu_custom_call.1} parent=1 // pred_check
      _
    $region43: #{tpu_custom_call.1} parent=1 // pred_check_branch
      %446 = sbr.rel (0) target = $region45
    $region44: #{tpu_custom_call.1} parent=1 // pred_region
      _
    $region45: #{tpu_custom_call.1} parent=1 // pred_fallthru
      _
    // Predicated region
    $region46: #{tpu_custom_call.1} parent=1 // pred_check
      _
    $region47: #{tpu_custom_call.1} parent=1 // pred_check_branch
      %448 = sbr.rel (0) target = $region49
    $region48: #{tpu_custom_call.1} parent=1 // pred_region
      _
    $region49: #{tpu_custom_call.1} parent=1 // pred_fallthru
      _
    %449 = vsyncpa [#allocation3], 1
    %450 = vsyncpa [#allocation5], 1

</llo_original>
